<compile_context>
chip_gen: v5e
topology: v5e:2x2
jax: 0.10.0
libtpu: 0.0.40
codegen_flags: <defaults>
</compile_context>

<pallas_src>
import functools
import math

import jax
import jax.numpy as jnp
from jax.experimental import pallas as pl
from jax.experimental.pallas import tpu as pltpu


# ---------------------------------------------------------------------------
# Kernels
# ---------------------------------------------------------------------------
def _load_pe_wide(pe_ref, *, n_batch, ts):
    """Slice the resident (S_pe, F) PE table for this tile and broadcast it
    across the batch by concatenating along the (dense) lane dimension."""
    s_pe = pe_ref.shape[0]
    start = pl.program_id(0) * ts
    if s_pe != ts:
        # Clamp so a cdiv-overhanging last tile never reads past the table
        # (its out-of-range output rows are masked on store anyway).
        start = jnp.minimum(start, s_pe - ts)
    pe_rows = pe_ref[pl.ds(start, ts), :]                       # (ts, F)
    return jnp.concatenate([pe_rows] * n_batch, axis=1)         # (ts, B*F)


def _pe_add_kernel(x_ref, pe_ref, o_ref, *, n_batch, ts):
    pe_wide = _load_pe_wide(pe_ref, n_batch=n_batch, ts=ts)
    o_ref[...] = (x_ref[...] + pe_wide).astype(o_ref.dtype)


def _pe_add_dropout_kernel(x_ref, pe_ref, bits_ref, o_ref, *,
                           n_batch, ts, keep_threshold, inv_keep):
    pe_wide = _load_pe_wide(pe_ref, n_batch=n_batch, ts=ts)
    val = x_ref[...] + pe_wide
    # Integer-domain keep/drop: P(keep) = 1 - p (no float convert / shifts).
    keep = bits_ref[...] >= jnp.uint32(keep_threshold)
    o_ref[...] = jnp.where(keep, val * inv_keep, 0.0).astype(o_ref.dtype)


# ---------------------------------------------------------------------------
# Module-equivalent wrapper
# ---------------------------------------------------------------------------
def make_pe_table(n_features: int, max_len: int = 5000) -> jnp.ndarray:
    """Deterministic __init__ of PositionalEncoding: pe of shape (max_len, 1, F)."""
    position = jnp.arange(max_len, dtype=jnp.float32)[:, None]            # (L, 1)
    div_term = jnp.exp(
        jnp.arange(0, n_features, 2, dtype=jnp.float32)
        * (-math.log(10000.0) / n_features)
    )                                                                      # (F/2,)
    args = position * div_term                                             # (L, F/2)
    pe = jnp.zeros((max_len, n_features), dtype=jnp.float32)
    pe = pe.at[:, 0::2].set(jnp.sin(args))
    pe = pe.at[:, 1::2].set(jnp.cos(args))
    return pe[:, None, :]                                                  # (L, 1, F)


_TILE_TARGET_BYTES = 2 * 1024 * 1024   # per-stream tile target (x / bits / out)


def positional_encoding_forward(
    x: jnp.ndarray,
    pe: jnp.ndarray,
    *,
    dropout_p: float = 0.1,
    training: bool = False,
    rng_key=None,
) -> jnp.ndarray:
    """Pallas implementation of PositionalEncoding.forward.

    x : (S, B, F) float32
    pe: (max_len, 1, F) float32
    Returns dropout(x + pe[:x.shape[1]]), shape (S, B, F).
    """
    S, B, F = x.shape
    # Faithful to the PyTorch reference quirk: pe is sliced with x.size(1),
    # so broadcasting requires x.shape[0] == x.shape[1].
    seq_len = x.shape[1]
    pe_rows = pe[:seq_len, 0, :].astype(x.dtype)                 # (seq_len, F)
    if pe_rows.shape[0] != S:
        raise ValueError(
            "Reference semantics (pe[:x.size(1)]) require x.shape[0] == x.shape[1]."
        )

    if training and dropout_p >= 1.0:
        return jnp.zeros_like(x)

    lanes = B * F
    x2 = x.reshape(S, lanes)                                     # lane-dense slab

    # Tile size: biggest that keeps each stream's tile around ~2 MiB.
    # 3 streams x 2 pipeline buffers x 2 MiB ~= 12 MiB, safely inside the
    # 32 MiB limit below (v5e default scoped is 16 MiB; v7x physical is 64 MiB).
    row_bytes = lanes * x2.dtype.itemsize
    if S * row_bytes <= _TILE_TARGET_BYTES:
        ts = S                                                   # single grid step
    else:
        ts = min(S, max(8, (_TILE_TARGET_BYTES // row_bytes) // 8 * 8))
    grid = (pl.cdiv(S, ts),)

    data_spec = pl.BlockSpec((ts, lanes), lambda i: (i, 0))
    pe_spec = pl.BlockSpec((S, F), lambda i: (0, 0))             # resident in VMEM

    compiler_params = pltpu.CompilerParams(
        dimension_semantics=("parallel",),                       # independent tiles
        vmem_limit_bytes=32 * 1024 * 1024,
    )

    use_dropout = training and dropout_p > 0.0
    if use_dropout:
        if rng_key is None:
            rng_key = jax.random.PRNGKey(0)
        # TODO(synk): in-kernel pltpu.prng_* has no interpret/CPU lowering, so
        # random bits are generated host-side; no bitwise parity with torch RNG.
        bits = jax.random.bits(rng_key, (S, lanes), dtype=jnp.uint32)
        keep_threshold = min(int(round(float(dropout_p) * 2.0 ** 32)), 2 ** 32 - 1)
        kernel = functools.partial(
            _pe_add_dropout_kernel,
            n_batch=B,
            ts=ts,
            keep_threshold=keep_threshold,
            inv_keep=float(1.0 / (1.0 - float(dropout_p))),
        )
        out2 = pl.pallas_call(
            kernel,
            out_shape=jax.ShapeDtypeStruct((S, lanes), x.dtype),
            grid=grid,
            in_specs=[data_spec, pe_spec, data_spec],
            out_specs=data_spec,
            compiler_params=compiler_params,
        )(x2, pe_rows, bits)
    else:
        kernel = functools.partial(_pe_add_kernel, n_batch=B, ts=ts)
        out2 = pl.pallas_call(
            kernel,
            out_shape=jax.ShapeDtypeStruct((S, lanes), x.dtype),
            grid=grid,
            in_specs=[data_spec, pe_spec],
            out_specs=data_spec,
            compiler_params=compiler_params,
        )(x2, pe_rows)

    return out2.reshape(S, B, F)


# ---------------------------------------------------------------------------
# Main
# ---------------------------------------------------------------------------
if __name__ == "__main__":
    key = jax.random.PRNGKey(0)

    # Small shapes: seq=8, batch=8, n_features=32.  (The reference forward
    # slices pe with x.size(1), so dim0 == dim1 is required for broadcast.)
    S, B, F = 8, 8, 32
    x = jax.random.normal(key, (S, B, F), dtype=jnp.float32)
    pe = make_pe_table(n_features=F, max_len=5000)

    # --- eval mode (dropout = identity): exact semantics check --------------
    out_eval = positional_encoding_forward(x, pe, dropout_p=0.1, training=False)
    out_eval = jax.block_until_ready(out_eval)
    ref_eval = x + pe[:B]                       # broadcast (B,1,F) vs (S,B,F)
    assert out_eval.shape == x.shape and out_eval.dtype == x.dtype
    assert jnp.allclose(out_eval, ref_eval, atol=1e-6, rtol=1e-6)

    # --- training mode: exercise the dropout path ----------------------------
    out_train = positional_encoding_forward(
        x, pe, dropout_p=0.1, training=True, rng_key=jax.random.PRNGKey(123)
    )
    out_train = jax.block_until_ready(out_train)
    # dropped elements are exactly zero; kept elements are scaled by 1/(1-p)
    kept = out_train != 0.0
    assert jnp.allclose(
        jnp.where(kept, out_train, 0.0),
        jnp.where(kept, ref_eval / (1.0 - 0.1), 0.0),
        atol=1e-5,
        rtol=1e-5,
    )

    print("KERNEL_OK")
</pallas_src>

<mosaic_0001>
module attributes {stable_mosaic.version = 11 : i64} {
  func.func @_pe_add_kernel(%arg0: i32, %arg1: memref<8x256xf32, #tpu.memory_space<vmem>>, %arg2: memref<8x32xf32, #tpu.memory_space<vmem>>, %arg3: memref<8x256xf32, #tpu.memory_space<vmem>>) attributes {dimension_semantics = [#tpu.dimension_semantics<parallel>], iteration_bounds = array<i64: 1>, scalar_prefetch = 0 : i64, scratch_operands = 0 : i64, tpu.core_type = #tpu.core_type<tc>, window_params = [{transform_indices = @transform_0, window_bounds = array<i64: 8, 256>}, {pipeline_mode = #tpu.pipeline_mode<synchronous>, transform_indices = @transform_1, window_bounds = array<i64: 8, 32>}, {transform_indices = @transform_2, window_bounds = array<i64: 8, 256>}]} {
    %c8_i32 = arith.constant 8 : i32
    %0 = arith.muli %arg0, %c8_i32 : i32
    %1 = arith.index_cast %0 : i32 to index
    %c0 = arith.constant 0 : index
    %2 = vector.load %arg2[%1, %c0] : memref<8x32xf32, #tpu.memory_space<vmem>>, vector<8x32xf32>
    %3 = tpu.concatenate %2, %2, %2, %2, %2, %2, %2, %2 in 1 : vector<8x32xf32>, vector<8x32xf32>, vector<8x32xf32>, vector<8x32xf32>, vector<8x32xf32>, vector<8x32xf32>, vector<8x32xf32>, vector<8x32xf32> -> vector<8x256xf32>
    %c0_0 = arith.constant 0 : index
    %c0_1 = arith.constant 0 : index
    %4 = vector.load %arg1[%c0_0, %c0_1] : memref<8x256xf32, #tpu.memory_space<vmem>>, vector<8x256xf32>
    %5 = arith.addf %4, %3 : vector<8x256xf32>
    %c0_2 = arith.constant 0 : index
    %c0_3 = arith.constant 0 : index
    %6 = vector.load %arg3[%c0_2, %c0_3] : memref<8x256xf32, #tpu.memory_space<vmem>>, vector<8x256xf32>
    tpu.vector_store %arg3[%c0_2, %c0_3], %5 {strides = array<i32>} : memref<8x256xf32, #tpu.memory_space<vmem>>, vector<8x256xf32>,
    return
  }
  func.func @transform_0(%arg0: i32) -> (i32, i32) {
    %c0_i32 = arith.constant 0 : i32
    %c0_i32_0 = arith.constant 0 : i32
    return %arg0, %c0_i32 : i32, i32
  }
  func.func @transform_1(%arg0: i32) -> (i32, i32) {
    %c0_i32 = arith.constant 0 : i32
    %c0_i32_0 = arith.constant 0 : i32
    %c0_i32_1 = arith.constant 0 : i32
    return %c0_i32, %c0_i32_0 : i32, i32
  }
  func.func @transform_2(%arg0: i32) -> (i32, i32) {
    %c0_i32 = arith.constant 0 : i32
    %c0_i32_0 = arith.constant 0 : i32
    return %arg0, %c0_i32 : i32, i32
  }
}

</mosaic_0001>

<llo_original>
// kernel: tpu_custom_call.1
$region0: #{tpu_custom_call.1}
  #allocation0 [shape = 'u32[]', space=smem, size = 0x4, offset = 0x4, fixed_abs, tag = 'smem constant byte address 0x4 - core index']
  #allocation1 [shape = 'u32[72,128]{1,0:T(1,128)}', space=vmem, size = 0x9000, scoped, tag = 'internal scratch']
  %s0 = inlined_call_operand.hbm [shape: f32[8,256], index: 0, kind: input, shape index: {}]
  %s1 = inlined_call_operand.hbm [shape: f32[8,32], index: 1, kind: input, shape index: {}]
  %s2 = inlined_call_operand.hbm [shape: f32[8,256], index: 2, kind: output, shape index: {}]
  %s3 = sld [smem:[#allocation0]]
  $region26: #{tpu_custom_call.1} parent=0
    _
  %s5 = ssub.s32 1, %s3
  %s6 = scalar_select 0, %s5, %s3
  $region1: #{tpu_custom_call.1} parent=0
    #allocation2 [shape = 'u8[8192]{0}', space=vmem, size = 0x2000, scoped, tag = 'input window, operand 0, single buffered']
    #allocation3 [shape = 's32[1]{0}', space=sflag, size = 0x4, scoped, tag = 'scoped memory for tpu_custom_call.1']
    #allocation4 [shape = 's32[1]{0}', space=sflag, size = 0x4, scoped, tag = 'scoped memory for tpu_custom_call.1']
    #allocation5 [shape = 'u8[4096]{0}', space=vmem, size = 0x1000, scoped, tag = 'input window, operand 1, single buffered']
    #allocation6 [shape = 's32[1]{0}', space=sflag, size = 0x4, scoped, tag = 'scoped memory for tpu_custom_call.1']
    #allocation7 [shape = 'u8[8192]{0}', space=vmem, size = 0x2000, scoped, tag = 'output window, operand 0, single buffered']
    %7 = vsyncpa [#allocation3], 0
    %8 = vsyncpa [#allocation6], 0
    %9 = vsyncpa [#allocation4], 0
    // Predicated region
    $region2: #{tpu_custom_call.1} parent=1 // pred_check
      _
    $region3: #{tpu_custom_call.1} parent=1 // pred_check_branch
      %11 = sbr.rel (0) target = $region5
    $region4: #{tpu_custom_call.1} parent=1 // pred_region
      %13 = vsyncadd [#allocation3], 0
      %s15 = sshll.u32 %s0, 4
      %s16 = int_to_ptr.hbm [resolvable:$true] %s15
      %s17 = sshll.u32 [#allocation2], 4
      %s18 = int_to_ptr.vmem [resolvable:$true] %s17
      %20 = dma.hbm_to_vmem [thread:$0]  %s16, 256, %s18, [#allocation3]
    $region5: #{tpu_custom_call.1} parent=1 // pred_fallthru
      _
    // Predicated region
    $region6: #{tpu_custom_call.1} parent=1 // pred_check
      _
    $region7: #{tpu_custom_call.1} parent=1 // pred_check_branch
      %22 = sbr.rel (0) target = $region9
    $region8: #{tpu_custom_call.1} parent=1 // pred_region
      %24 = vsyncadd [#allocation6], 0
      %s26 = sshll.u32 %s1, 4
      %s27 = int_to_ptr.hbm [resolvable:$true] %s26
      %s28 = sshll.u32 [#allocation5], 4
      %s29 = int_to_ptr.vmem [resolvable:$true] %s28
      %31 = dma.hbm_to_vmem [thread:$0]  %s27, 128, %s29, [#allocation6]
    $region9: #{tpu_custom_call.1} parent=1 // pred_fallthru
      _
    // Predicated region
    $region10: #{tpu_custom_call.1} parent=1 // pred_check
      _
    $region11: #{tpu_custom_call.1} parent=1 // pred_check_branch
      %33 = sbr.rel (0) target = $region13
    $region12: #{tpu_custom_call.1} parent=1 // pred_region
      %35 = dma.done [#allocation3], 256
    $region13: #{tpu_custom_call.1} parent=1 // pred_fallthru
      _
    // Predicated region
    $region14: #{tpu_custom_call.1} parent=1 // pred_check
      _
    $region15: #{tpu_custom_call.1} parent=1 // pred_check_branch
      %37 = sbr.rel (0) target = $region17
    $region16: #{tpu_custom_call.1} parent=1 // pred_region
      %39 = dma.done [#allocation6], 128
    $region17: #{tpu_custom_call.1} parent=1 // pred_fallthru
      _
    %s40 = smul.u32 0, 8
    %s41 = scalar_lea.vmem [#allocation5], %s40
    %v42 = vld [vmem:[%s41] sm:$0xff]
    %44 = vrot.lane.b32.xlu0 %v42, 32
    %v45 = vpop.permute.xlu0 %44
    %47 = vrot.lane.b32.xlu0 %v42, 64
    %v48 = vpop.permute.xlu0 %47
    %50 = vrot.lane.b32.xlu0 %v42, 96
    %v51 = vpop.permute.xlu0 %50
    %vm53 = vcmask 261120
    %v54 = vsel %vm53, %v42, %v45
    %vm55 = vcmask 523264
    %v56 = vsel %vm55, %v54, %v48
    %vm57 = vcmask 785408
    %v58 = vsel %vm57, %v56, %v51
    %v59 = vld [vmem:[#allocation2] sm:$0xff]
    %v60 = vld [vmem:[#allocation2 + $0x8] sm:$0xff]
    %v61 = vadd.f32 %v59, %v58
    %v62 = vadd.f32 %v60, %v58
    %63 = vst [vmem:[#allocation7] sm:$0xff] %v61
    %64 = vst [vmem:[#allocation7 + $0x8] sm:$0xff] %v62
    // Predicated region
    $region18: #{tpu_custom_call.1} parent=1 // pred_check
      _
    $region19: #{tpu_custom_call.1} parent=1 // pred_check_branch
      %66 = sbr.rel (0) target = $region21
    $region20: #{tpu_custom_call.1} parent=1 // pred_region
      %68 = vsyncadd [#allocation4], 0
      %s70 = sshll.u32 [#allocation7], 4
      %s71 = int_to_ptr.vmem [resolvable:$true] %s70
      %s72 = sshll.u32 %s2, 4
      %s73 = int_to_ptr.hbm [resolvable:$true] %s72
      %75 = dma.vmem_to_hbm [thread:$0]  %s71, 256, %s73, [#allocation4]
    $region21: #{tpu_custom_call.1} parent=1 // pred_fallthru
      _
    // Predicated region
    $region22: #{tpu_custom_call.1} parent=1 // pred_check
      _
    $region23: #{tpu_custom_call.1} parent=1 // pred_check_branch
      %77 = sbr.rel (0) target = $region25
    $region24: #{tpu_custom_call.1} parent=1 // pred_region
      %79 = dma.done [#allocation4], 256
    $region25: #{tpu_custom_call.1} parent=1 // pred_fallthru
      _
    %80 = vsyncpa [#allocation3], 1
    %81 = vsyncpa [#allocation6], 1
    %82 = vsyncpa [#allocation4], 1

</llo_original>
